<compile_context>
chip_gen: v7x
topology: tpu7x:2x2x1
jax: 0.10.0
libtpu: 0.0.40
codegen_flags: <defaults>
</compile_context>

<pallas_src>
import functools
import math

import jax
import jax.numpy as jnp
from jax import lax
from jax.experimental import pallas as pl
from jax.experimental.pallas import tpu as pltpu


# ---------------------------------------------------------------------------
# Kernel: one (batch, head-group, query-tile) grid step.
# ---------------------------------------------------------------------------
def _attn_kernel(q_ref, k_ref, v_ref, m_ref, out_ref, attn_ref, *,
                 inv_temperature, block_h):
    # q_ref:    (1, block_h, Tq, D)
    # k_ref:    (1, block_h, Lk, D)   -- reused across all query tiles
    # v_ref:    (1, block_h, Lk, D)
    # m_ref:    (1, Tq, Lk)           -- shared by every head in the group
    # out_ref:  (1, block_h, Tq, D)   -- native (B, H, L, D) layout
    # attn_ref: (1, block_h, Tq, Lk)
    keep = m_ref[0] != 0                                  # one mask read / step
    neg = jnp.float32(-1000000.0)

    # block_h is capped (<= 8), so this fully-unrolled loop stays short and the
    # per-head (Tq, Lk) f32 intermediates do not inflate vreg pressure.
    for h in range(block_h):
        qh = q_ref[0, h] * inv_temperature                # scale by mul, native dtype
        kh = k_ref[0, h]
        vh = v_ref[0, h]

        # scores = (q / T) @ k^T -- contract last dims, no explicit transpose.
        scores = lax.dot_general(
            qh, kh, (((1,), (1,)), ((), ())),
            preferred_element_type=jnp.float32)           # (Tq, Lk) f32

        # masked_fill(mask == 0, -1e6)
        scores = jnp.where(keep, scores, neg)

        # Numerically stable softmax; all intermediates stay f32.
        smax = jnp.max(scores, axis=-1, keepdims=True)
        p = jnp.exp(scores - smax)
        denom = jnp.sum(p, axis=-1, keepdims=True)
        p = p * pl.reciprocal(denom, approx=True)         # EUP vrcp, ~free next to exp

        # Single cast, reused for both the attn output and the PV matmul.
        p_lo = p.astype(attn_ref.dtype)
        attn_ref[0, h] = p_lo

        o = lax.dot_general(
            p_lo, vh, (((1,), (0,)), ((), ())),
            preferred_element_type=jnp.float32)           # (Tq, D) f32
        out_ref[0, h] = o.astype(out_ref.dtype)           # full-block store


# ---------------------------------------------------------------------------
# Tile sizing helpers (generation-aware VMEM budget).
# ---------------------------------------------------------------------------
def _round_up(x, m):
    return (x + m - 1) // m * m


def _tpu_vmem_and_kind():
    """(physical per-core VMEM bytes, device_kind) with safe fallbacks."""
    kind = ""
    try:
        kind = jax.devices()[0].device_kind.lower()
    except Exception:
        pass
    vmem = None
    get_info = getattr(pltpu, "get_tpu_info", None)
    if get_info is not None:
        try:
            vmem = int(getattr(get_info(), "vmem_capacity_bytes", 0)) or None
        except Exception:
            vmem = None
    if vmem is None:
        # v7x: 64 MiB per TensorCore; v5e/v6e: 128 MiB.
        vmem = 64 * 1024 * 1024 if "v7" in kind else 128 * 1024 * 1024
    return vmem, kind


def _pick_tiles(H, L, Lk, D, itemsize, mask_itemsize, vmem_limit, kind,
                block_q=None, block_h=None):
    # Query tile: 256 on v6e/v7x (feeds the 2x(256x256) MXUs), 128 on v5e or
    # unknown chips; never larger than the 8-aligned sequence length.
    if block_q is None:
        block_q = 128 if "v5" in kind else 256
    block_q = int(max(8, min(block_q, _round_up(L, 8))))
    block_q = _round_up(block_q, 8)

    budget = int(0.9 * vmem_limit)

    def footprint(bh, bq):
        # q/k/v/out/attn tiles are double-buffered by the auto-pipeline; the
        # per-head (bq, Lk) f32 softmax intermediates are counted as scratch.
        qkv = bh * bq * D + 2 * bh * Lk * D
        outs = bh * bq * D + bh * bq * Lk
        tiles = (qkv + outs) * itemsize + bq * Lk * mask_itemsize
        return 2 * tiles + 2 * bq * Lk * 4

    if block_h is not None:
        assert H % block_h == 0, "block_h must divide H"
        return block_q, int(block_h)

    def pick_bh(bq):
        for bh in range(min(H, 8), 0, -1):     # cap keeps the head loop short
            if H % bh == 0 and footprint(bh, bq) <= budget:
                return bh
        return None

    bh = pick_bh(block_q)
    while bh is None and block_q > 8:
        block_q = max(8, _round_up(block_q // 2, 8))
        bh = pick_bh(block_q)
    return block_q, (bh if bh is not None else 1)


# ---------------------------------------------------------------------------
# Wrapper
# ---------------------------------------------------------------------------
def scaled_dot_product_attention(q, k, v, mask, temperature, *,
                                 block_q=None, block_h=None):
    """q, k, v: (B, H, L|Lk, D); mask: (B, 1, L, Lk). Returns (output, attn).

    Matches ScaledDotProductAttention.forward in eval mode (dropout=identity).
    """
    B, H, L, D = q.shape
    Lk = k.shape[2]
    assert k.shape == (B, H, Lk, D) and v.shape == (B, H, Lk, D)
    assert mask.shape == (B, 1, L, Lk)

    itemsize = jnp.dtype(q.dtype).itemsize

    vmem_phys, kind = _tpu_vmem_and_kind()
    # Leave ~20% of physical VMEM as compiler-scratch headroom:
    # ~51 MiB on v7x, ~102 MiB on v5e/v6e.
    vmem_limit = int(0.8 * vmem_phys)

    mask2d = mask.reshape(B, L, Lk)            # squeeze the broadcast head dim
    mask_itemsize = 1 if mask2d.dtype == jnp.bool_ else jnp.dtype(mask2d.dtype).itemsize

    block_q, block_h = _pick_tiles(
        H, L, Lk, D, itemsize, mask_itemsize, vmem_limit, kind,
        block_q=block_q, block_h=block_h)

    n_hg = H // block_h
    Lp = _round_up(L, block_q)
    n_q = Lp // block_q

    # int8 mask only pays off when the mask tile is re-read across head groups;
    # bool is always widened to int8 for a TPU-friendly element type.
    if mask2d.dtype == jnp.bool_ or (n_hg >= 2 and mask2d.dtype.itemsize > 1):
        mask2d = (mask2d != 0).astype(jnp.int8)

    # Pad the query axis to a multiple of block_q (padded rows fully masked,
    # sliced off below) instead of collapsing to a single block_q = L tile.
    qp = q
    if Lp != L:
        qp = jnp.pad(q, ((0, 0), (0, 0), (0, Lp - L), (0, 0)))
        mask2d = jnp.pad(mask2d, ((0, 0), (0, Lp - L), (0, 0)))

    kernel = functools.partial(
        _attn_kernel,
        inv_temperature=1.0 / float(temperature),
        block_h=block_h,
    )

    out, attn = pl.pallas_call(
        kernel,
        grid=(B, n_hg, n_q),
        in_specs=[
            pl.BlockSpec((1, block_h, block_q, D), lambda b, g, qi: (b, g, qi, 0)),  # q
            pl.BlockSpec((1, block_h, Lk, D),      lambda b, g, qi: (b, g, 0, 0)),   # k (reused over qi)
            pl.BlockSpec((1, block_h, Lk, D),      lambda b, g, qi: (b, g, 0, 0)),   # v (reused over qi)
            pl.BlockSpec((1, block_q, Lk),         lambda b, g, qi: (b, qi, 0)),     # mask (shared by heads)
        ],
        out_specs=[
            pl.BlockSpec((1, block_h, block_q, D),  lambda b, g, qi: (b, g, qi, 0)),  # output (B,H,L,D)
            pl.BlockSpec((1, block_h, block_q, Lk), lambda b, g, qi: (b, g, qi, 0)),  # attn
        ],
        out_shape=[
            jax.ShapeDtypeStruct((B, H, Lp, D), q.dtype),
            jax.ShapeDtypeStruct((B, H, Lp, Lk), q.dtype),
        ],
        compiler_params=pltpu.CompilerParams(
            # qi is innermost/'arbitrary' so megacore (v7x) shards over batch /
            # head-group instead of splitting the K/V-reuse axis.
            dimension_semantics=("parallel", "parallel", "arbitrary"),
            vmem_limit_bytes=vmem_limit,
        ),
    )(qp, k, v, mask2d)

    if Lp != L:
        out = out[:, :, :L, :]
        attn = attn[:, :, :L, :]
    return out, attn


# ---------------------------------------------------------------------------
# Reference + demo
# ---------------------------------------------------------------------------
def _reference(q, k, v, mask, temperature):
    attn = jnp.einsum("bhqd,bhkd->bhqk", q / temperature, k,
                      precision=lax.Precision.HIGHEST)
    attn = jnp.where(mask == 0, -1000000.0, attn)
    attn = jax.nn.softmax(attn, axis=-1)
    out = jnp.einsum("bhqk,bhkd->bhqd", attn, v,
                     precision=lax.Precision.HIGHEST)
    return out, attn


if __name__ == "__main__":
    root_key = jax.random.PRNGKey(0)

    def run_case(B, H, L, Lk, D, **kw):
        temperature = math.sqrt(D)
        kq, kk, kv = jax.random.split(jax.random.fold_in(root_key, 131 * L + H), 3)
        q = jax.random.normal(kq, (B, H, L, D), dtype=jnp.float32)
        k = jax.random.normal(kk, (B, H, Lk, D), dtype=jnp.float32)
        v = jax.random.normal(kv, (B, H, Lk, D), dtype=jnp.float32)
        # Causal mask broadcast over heads (1 = keep, 0 = masked).
        mask = jnp.tril(jnp.ones((L, Lk), dtype=jnp.int32))[None, None, :, :]
        mask = jnp.broadcast_to(mask, (B, 1, L, Lk))

        out, attn = scaled_dot_product_attention(q, k, v, mask, temperature, **kw)
        jax.block_until_ready((out, attn))

        out_ref, attn_ref = _reference(q, k, v, mask, temperature)
        # Tolerance covers TPU default matmul precision (bf16 MXU passes for
        # f32 inputs) and the approximate softmax reciprocal; an indexing or
        # layout bug would exceed it by orders of magnitude.
        assert jnp.allclose(out, out_ref, atol=2e-2, rtol=2e-2), "output mismatch"
        assert jnp.allclose(attn, attn_ref, atol=2e-2, rtol=2e-2), "attn mismatch"

    # Small fully-aligned case: single head group, no query padding.
    run_case(B=2, H=2, L=8, Lk=8, D=16)
    # Exercises head grouping (n_hg=2), int8 mask path, and query padding (20->24).
    run_case(B=1, H=4, L=20, Lk=20, D=8, block_q=8, block_h=2)

    print("KERNEL_OK")
</pallas_src>

<mosaic_0001>
module attributes {stable_mosaic.version = 11 : i64} {
  func.func @_attn_kernel(%arg0: i32, %arg1: i32, %arg2: i32, %arg3: memref<1x2x8x16xf32, #tpu.memory_space<vmem>>, %arg4: memref<1x2x8x16xf32, #tpu.memory_space<vmem>>, %arg5: memref<1x2x8x16xf32, #tpu.memory_space<vmem>>, %arg6: memref<1x8x8xi32, #tpu.memory_space<vmem>>, %arg7: memref<1x2x8x16xf32, #tpu.memory_space<vmem>>, %arg8: memref<1x2x8x8xf32, #tpu.memory_space<vmem>>) attributes {dimension_semantics = [#tpu.dimension_semantics<parallel>, #tpu.dimension_semantics<parallel>, #tpu.dimension_semantics<arbitrary>], iteration_bounds = array<i64: 2, 1, 1>, scalar_prefetch = 0 : i64, scratch_operands = 0 : i64, tpu.core_type = #tpu.core_type<tc>, window_params = [{transform_indices = @transform_0, window_bounds = array<i64: 1, 2, 8, 16>}, {transform_indices = @transform_1, window_bounds = array<i64: 1, 2, 8, 16>}, {transform_indices = @transform_2, window_bounds = array<i64: 1, 2, 8, 16>}, {transform_indices = @transform_3, window_bounds = array<i64: 1, 8, 8>}, {transform_indices = @transform_4, window_bounds = array<i64: 1, 2, 8, 16>}, {transform_indices = @transform_5, window_bounds = array<i64: 1, 2, 8, 8>}]} {
    %c0 = arith.constant 0 : index
    %c0_0 = arith.constant 0 : index
    %c0_1 = arith.constant 0 : index
    %0 = vector.load %arg6[%c0, %c0_0, %c0_1] : memref<1x8x8xi32, #tpu.memory_space<vmem>>, vector<1x8x8xi32>
    %1 = vector.shape_cast %0 : vector<1x8x8xi32> to vector<8x8xi32>
    %c0_i32 = arith.constant 0 : i32
    %2 = vector.broadcast %c0_i32 : i32 to vector<8x8xi32>
    %3 = arith.cmpi ne, %1, %2 : vector<8x8xi32>
    %c0_2 = arith.constant 0 : index
    %c0_3 = arith.constant 0 : index
    %c0_4 = arith.constant 0 : index
    %c0_5 = arith.constant 0 : index
    %4 = vector.load %arg3[%c0_2, %c0_3, %c0_4, %c0_5] : memref<1x2x8x16xf32, #tpu.memory_space<vmem>>, vector<1x1x8x16xf32>
    %5 = vector.shape_cast %4 : vector<1x1x8x16xf32> to vector<8x16xf32>
    %cst = arith.constant 2.500000e-01 : f32
    %6 = vector.broadcast %cst : f32 to vector<8x16xf32>
    %7 = arith.mulf %5, %6 : vector<8x16xf32>
    %c0_6 = arith.constant 0 : index
    %c0_7 = arith.constant 0 : index
    %c0_8 = arith.constant 0 : index
    %c0_9 = arith.constant 0 : index
    %8 = vector.load %arg4[%c0_6, %c0_7, %c0_8, %c0_9] : memref<1x2x8x16xf32, #tpu.memory_space<vmem>>, vector<1x1x8x16xf32>
    %9 = vector.shape_cast %8 : vector<1x1x8x16xf32> to vector<8x16xf32>
    %c0_10 = arith.constant 0 : index
    %c0_11 = arith.constant 0 : index
    %c0_12 = arith.constant 0 : index
    %c0_13 = arith.constant 0 : index
    %10 = vector.load %arg5[%c0_10, %c0_11, %c0_12, %c0_13] : memref<1x2x8x16xf32, #tpu.memory_space<vmem>>, vector<1x1x8x16xf32>
    %11 = vector.shape_cast %10 : vector<1x1x8x16xf32> to vector<8x16xf32>
    %cst_14 = arith.constant dense<0.000000e+00> : vector<8x8xf32>
    %12 = tpu.matmul %7, %9, %cst_14 {dimension_numbers = #tpu.dot_dimension_numbers<[1], [1], [0], [0], [0, 0, 1, 0], [], []>} : vector<8x16xf32>, vector<8x16xf32>, vector<8x8xf32> -> vector<8x8xf32>
    %cst_15 = arith.constant -1.000000e+06 : f32
    %13 = vector.broadcast %cst_15 : f32 to vector<8x8xf32>
    %14 = arith.select %3, %12, %13 : vector<8x8xi1>, vector<8x8xf32>
    %cst_16 = arith.constant dense<0xFF800000> : vector<8xf32>
    %15 = vector.multi_reduction <maximumf>, %14, %cst_16 [1] : vector<8x8xf32> to vector<8xf32>
    %16 = vector.shape_cast %15 : vector<8xf32> to vector<8x1xf32>
    %17 = vector.broadcast %16 : vector<8x1xf32> to vector<8x8xf32>
    %18 = arith.subf %14, %17 : vector<8x8xf32>
    %19 = math.exp %18 : vector<8x8xf32>
    %cst_17 = arith.constant dense<0.000000e+00> : vector<8xf32>
    %20 = vector.multi_reduction <add>, %19, %cst_17 [1] : vector<8x8xf32> to vector<8xf32>
    %21 = vector.shape_cast %20 : vector<8xf32> to vector<8x1xf32>
    %22 = tpu.reciprocal %21 {approx = true} : vector<8x1xf32> -> vector<8x1xf32>
    %23 = vector.broadcast %22 : vector<8x1xf32> to vector<8x8xf32>
    %24 = arith.mulf %19, %23 : vector<8x8xf32>
    %c0_18 = arith.constant 0 : index
    %c0_19 = arith.constant 0 : index
    %c0_20 = arith.constant 0 : index
    %c0_21 = arith.constant 0 : index
    %25 = vector.load %arg8[%c0_18, %c0_19, %c0_20, %c0_21] : memref<1x2x8x8xf32, #tpu.memory_space<vmem>>, vector<1x1x8x8xf32>
    %26 = vector.shape_cast %25 : vector<1x1x8x8xf32> to vector<8x8xf32>
    %27 = vector.shape_cast %24 : vector<8x8xf32> to vector<1x1x8x8xf32>
    tpu.vector_store %arg8[%c0_18, %c0_19, %c0_20, %c0_21], %27 {strides = array<i32>} : memref<1x2x8x8xf32, #tpu.memory_space<vmem>>, vector<1x1x8x8xf32>,
    %cst_22 = arith.constant dense<0.000000e+00> : vector<8x16xf32>
    %28 = tpu.matmul %24, %11, %cst_22 {dimension_numbers = #tpu.dot_dimension_numbers<[1], [0], [0], [1], [0, 0, 1, 1], [], []>} : vector<8x8xf32>, vector<8x16xf32>, vector<8x16xf32> -> vector<8x16xf32>
    %c0_23 = arith.constant 0 : index
    %c0_24 = arith.constant 0 : index
    %c0_25 = arith.constant 0 : index
    %c0_26 = arith.constant 0 : index
    %29 = vector.load %arg7[%c0_23, %c0_24, %c0_25, %c0_26] : memref<1x2x8x16xf32, #tpu.memory_space<vmem>>, vector<1x1x8x16xf32>
    %30 = vector.shape_cast %29 : vector<1x1x8x16xf32> to vector<8x16xf32>
    %31 = vector.shape_cast %28 : vector<8x16xf32> to vector<1x1x8x16xf32>
    tpu.vector_store %arg7[%c0_23, %c0_24, %c0_25, %c0_26], %31 {strides = array<i32>} : memref<1x2x8x16xf32, #tpu.memory_space<vmem>>, vector<1x1x8x16xf32>,
    %c0_27 = arith.constant 0 : index
    %c1 = arith.constant 1 : index
    %c0_28 = arith.constant 0 : index
    %c0_29 = arith.constant 0 : index
    %32 = vector.load %arg3[%c0_27, %c1, %c0_28, %c0_29] : memref<1x2x8x16xf32, #tpu.memory_space<vmem>>, vector<1x1x8x16xf32>
    %33 = vector.shape_cast %32 : vector<1x1x8x16xf32> to vector<8x16xf32>
    %cst_30 = arith.constant 2.500000e-01 : f32
    %34 = vector.broadcast %cst_30 : f32 to vector<8x16xf32>
    %35 = arith.mulf %33, %34 : vector<8x16xf32>
    %c0_31 = arith.constant 0 : index
    %c1_32 = arith.constant 1 : index
    %c0_33 = arith.constant 0 : index
    %c0_34 = arith.constant 0 : index
    %36 = vector.load %arg4[%c0_31, %c1_32, %c0_33, %c0_34] : memref<1x2x8x16xf32, #tpu.memory_space<vmem>>, vector<1x1x8x16xf32>
    %37 = vector.shape_cast %36 : vector<1x1x8x16xf32> to vector<8x16xf32>
    %c0_35 = arith.constant 0 : index
    %c1_36 = arith.constant 1 : index
    %c0_37 = arith.constant 0 : index
    %c0_38 = arith.constant 0 : index
    %38 = vector.load %arg5[%c0_35, %c1_36, %c0_37, %c0_38] : memref<1x2x8x16xf32, #tpu.memory_space<vmem>>, vector<1x1x8x16xf32>
    %39 = vector.shape_cast %38 : vector<1x1x8x16xf32> to vector<8x16xf32>
    %cst_39 = arith.constant dense<0.000000e+00> : vector<8x8xf32>
    %40 = tpu.matmul %35, %37, %cst_39 {dimension_numbers = #tpu.dot_dimension_numbers<[1], [1], [0], [0], [0, 0, 1, 0], [], []>} : vector<8x16xf32>, vector<8x16xf32>, vector<8x8xf32> -> vector<8x8xf32>
    %cst_40 = arith.constant -1.000000e+06 : f32
    %41 = vector.broadcast %cst_40 : f32 to vector<8x8xf32>
    %42 = arith.select %3, %40, %41 : vector<8x8xi1>, vector<8x8xf32>
    %cst_41 = arith.constant dense<0xFF800000> : vector<8xf32>
    %43 = vector.multi_reduction <maximumf>, %42, %cst_41 [1] : vector<8x8xf32> to vector<8xf32>
    %44 = vector.shape_cast %43 : vector<8xf32> to vector<8x1xf32>
    %45 = vector.broadcast %44 : vector<8x1xf32> to vector<8x8xf32>
    %46 = arith.subf %42, %45 : vector<8x8xf32>
    %47 = math.exp %46 : vector<8x8xf32>
    %cst_42 = arith.constant dense<0.000000e+00> : vector<8xf32>
    %48 = vector.multi_reduction <add>, %47, %cst_42 [1] : vector<8x8xf32> to vector<8xf32>
    %49 = vector.shape_cast %48 : vector<8xf32> to vector<8x1xf32>
    %50 = tpu.reciprocal %49 {approx = true} : vector<8x1xf32> -> vector<8x1xf32>
    %51 = vector.broadcast %50 : vector<8x1xf32> to vector<8x8xf32>
    %52 = arith.mulf %47, %51 : vector<8x8xf32>
    %c0_43 = arith.constant 0 : index
    %c1_44 = arith.constant 1 : index
    %c0_45 = arith.constant 0 : index
    %c0_46 = arith.constant 0 : index
    %53 = vector.load %arg8[%c0_43, %c1_44, %c0_45, %c0_46] : memref<1x2x8x8xf32, #tpu.memory_space<vmem>>, vector<1x1x8x8xf32>
    %54 = vector.shape_cast %53 : vector<1x1x8x8xf32> to vector<8x8xf32>
    %55 = vector.shape_cast %52 : vector<8x8xf32> to vector<1x1x8x8xf32>
    tpu.vector_store %arg8[%c0_43, %c1_44, %c0_45, %c0_46], %55 {strides = array<i32>} : memref<1x2x8x8xf32, #tpu.memory_space<vmem>>, vector<1x1x8x8xf32>,
    %cst_47 = arith.constant dense<0.000000e+00> : vector<8x16xf32>
    %56 = tpu.matmul %52, %39, %cst_47 {dimension_numbers = #tpu.dot_dimension_numbers<[1], [0], [0], [1], [0, 0, 1, 1], [], []>} : vector<8x8xf32>, vector<8x16xf32>, vector<8x16xf32> -> vector<8x16xf32>
    %c0_48 = arith.constant 0 : index
    %c1_49 = arith.constant 1 : index
    %c0_50 = arith.constant 0 : index
    %c0_51 = arith.constant 0 : index
    %57 = vector.load %arg7[%c0_48, %c1_49, %c0_50, %c0_51] : memref<1x2x8x16xf32, #tpu.memory_space<vmem>>, vector<1x1x8x16xf32>
    %58 = vector.shape_cast %57 : vector<1x1x8x16xf32> to vector<8x16xf32>
    %59 = vector.shape_cast %56 : vector<8x16xf32> to vector<1x1x8x16xf32>
    tpu.vector_store %arg7[%c0_48, %c1_49, %c0_50, %c0_51], %59 {strides = array<i32>} : memref<1x2x8x16xf32, #tpu.memory_space<vmem>>, vector<1x1x8x16xf32>,
    return
  }
  func.func @transform_0(%arg0: i32, %arg1: i32, %arg2: i32) -> (i32, i32, i32, i32) {
    %c0_i32 = arith.constant 0 : i32
    %c0_i32_0 = arith.constant 0 : i32
    return %arg0, %arg1, %arg2, %c0_i32 : i32, i32, i32, i32
  }
  func.func @transform_1(%arg0: i32, %arg1: i32, %arg2: i32) -> (i32, i32, i32, i32) {
    %c0_i32 = arith.constant 0 : i32
    %c0_i32_0 = arith.constant 0 : i32
    %c0_i32_1 = arith.constant 0 : i32
    return %arg0, %arg1, %c0_i32, %c0_i32_0 : i32, i32, i32, i32
  }
  func.func @transform_2(%arg0: i32, %arg1: i32, %arg2: i32) -> (i32, i32, i32, i32) {
    %c0_i32 = arith.constant 0 : i32
    %c0_i32_0 = arith.constant 0 : i32
    %c0_i32_1 = arith.constant 0 : i32
    return %arg0, %arg1, %c0_i32, %c0_i32_0 : i32, i32, i32, i32
  }
  func.func @transform_3(%arg0: i32, %arg1: i32, %arg2: i32) -> (i32, i32, i32) {
    %c0_i32 = arith.constant 0 : i32
    %c0_i32_0 = arith.constant 0 : i32
    return %arg0, %arg2, %c0_i32 : i32, i32, i32
  }
  func.func @transform_4(%arg0: i32, %arg1: i32, %arg2: i32) -> (i32, i32, i32, i32) {
    %c0_i32 = arith.constant 0 : i32
    %c0_i32_0 = arith.constant 0 : i32
    return %arg0, %arg1, %arg2, %c0_i32 : i32, i32, i32, i32
  }
  func.func @transform_5(%arg0: i32, %arg1: i32, %arg2: i32) -> (i32, i32, i32, i32) {
    %c0_i32 = arith.constant 0 : i32
    %c0_i32_0 = arith.constant 0 : i32
    return %arg0, %arg1, %arg2, %c0_i32 : i32, i32, i32, i32
  }
}

</mosaic_0001>

<llo_original>
// kernel: tpu_custom_call.1
$region0: #{tpu_custom_call.1}
  #allocation0 [shape = 'u32[]', space=smem, size = 0x4, offset = 0x4, fixed_abs, tag = 'smem constant byte address 0x4 - core index']
  #allocation1 [shape = 'u32[144,128]{1,0:T(1,128)}', space=vmem, size = 0x12000, scoped, tag = 'internal scratch']
  %s0 = inlined_call_operand.hbm [shape: f32[2,2,8,16], index: 0, kind: input, shape index: {}]
  %s1 = inlined_call_operand.hbm [shape: f32[2,2,8,16], index: 1, kind: input, shape index: {}]
  %s2 = inlined_call_operand.hbm [shape: f32[2,2,8,16], index: 2, kind: input, shape index: {}]
  %s3 = inlined_call_operand.hbm [shape: s32[2,8,8], index: 3, kind: input, shape index: {}]
  %s4 = inlined_call_operand.hbm [shape: f32[2,2,8,16], index: 4, kind: output, shape index: {0}]
  %s5 = inlined_call_operand.hbm [shape: f32[2,2,8,8], index: 5, kind: output, shape index: {1}]
  %6 = xla_tuple %s4, %s5
  %s7 = sld [smem:[#allocation0]]
  $region73: #{tpu_custom_call.1} parent=0
    _
  %s9 = ssub.s32 1, %s7
  %s10 = scalar_select 0, %s9, %s7
  $region1: #{tpu_custom_call.1} parent=0
    #allocation2 [shape = 'u8[16384]{0}', space=vmem, size = 0x4000, scoped, tag = 'input window, operand 0']
    #allocation3 [shape = 's32[2]{0}', space=sflag, size = 0x8, scoped, tag = 'scoped memory for tpu_custom_call.1']
    #allocation4 [shape = 's32[2]{0}', space=sflag, size = 0x8, scoped, tag = 'scoped memory for tpu_custom_call.1']
    #allocation5 [shape = 'u8[16384]{0}', space=vmem, size = 0x4000, scoped, tag = 'input window, operand 1']
    #allocation6 [shape = 's32[2]{0}', space=sflag, size = 0x8, scoped, tag = 'scoped memory for tpu_custom_call.1']
    #allocation7 [shape = 'u8[16384]{0}', space=vmem, size = 0x4000, scoped, tag = 'input window, operand 2']
    #allocation8 [shape = 'u8[8192]{0}', space=vmem, size = 0x2000, scoped, tag = 'input window, operand 3']
    #allocation9 [shape = 's32[2]{0}', space=sflag, size = 0x8, scoped, tag = 'scoped memory for tpu_custom_call.1']
    #allocation10 [shape = 'u8[16384]{0}', space=vmem, size = 0x4000, scoped, tag = 'output window, operand 0']
    #allocation11 [shape = 'u8[16384]{0}', space=vmem, size = 0x4000, scoped, tag = 'output window, operand 1']
    #allocation12 [shape = 's32[2]{0}', space=sflag, size = 0x8, scoped, tag = 'scoped memory for tpu_custom_call.1']
    %11 = vsyncpa [#allocation3], 0
    %s12 = scalar_lea.sflag [#allocation3], 1
    %13 = vsyncpa %s12, 0
    %14 = vsyncpa [#allocation6], 0
    %s15 = scalar_lea.sflag [#allocation6], 1
    %16 = vsyncpa %s15, 0
    %17 = vsyncpa [#allocation9], 0
    %s18 = scalar_lea.sflag [#allocation9], 1
    %19 = vsyncpa %s18, 0
    %20 = vsyncpa [#allocation4], 0
    %s21 = scalar_lea.sflag [#allocation4], 1
    %22 = vsyncpa %s21, 0
    %23 = vsyncpa [#allocation12], 0
    %s24 = scalar_lea.sflag [#allocation12], 1
    %25 = vsyncpa %s24, 0
    loop: start=0, step=1, limit=4
    $region2: #{tpu_custom_call.1} parent=1 // loop_pre_header
      _
    $region3: #{tpu_custom_call.1} parent=1 // loop_header
      %s27 = sphi 0, %s31
      %p28 = scmp.ge.s32.totalorder %s27, 4
      %s34 = sphi 0, %s53
      %s35 = sphi 0, %s49
      %s36 = sphi 0, %s45
      %s37 = sphi 0, %s34
      %s38 = sphi 0, %s35
      %s39 = sphi 0, %s36
      %s40 = sphi 0, %s37
      %s41 = sphi 0, %s38
      %s42 = sphi 0, %s39
      %s60 = sphi 0, %s62
      %s63 = sphi 0, %s60
      %s64 = sphi 0, %s63
      %s80 = sphi 0, %s64
      %s88 = sphi 0, %s90
      %s91 = sphi 0, %s88
      %s92 = sphi 0, %s91
      %s108 = sphi 0, %s92
      %s116 = sphi 0, %s118
      %s119 = sphi 0, %s116
      %s120 = sphi 0, %s119
      %s136 = sphi 0, %s120
      %s144 = sphi 0, %s146
      %s147 = sphi 0, %s144
      %s148 = sphi 0, %s147
      %s164 = sphi 0, %s148
      %s174 = sphi 0, %s176
      %s177 = sphi 0, %s174
      %s178 = sphi 0, %s177
      %s194 = sphi 0, %s178
      %s204 = sphi 0, %s206
      %s207 = sphi 0, %s204
      %s208 = sphi 0, %s207
      %s224 = sphi 0, %s208
    $region4: #{tpu_custom_call.1} parent=1 // loop_header_branch
      %30 = sbr.rel (%p28) target = $region8
    $region5: #{tpu_custom_call.1} parent=1 // loop_body
      %s32 = ssub.s32 %s27, 1
      %s33 = ssub.s32 %s27, 2
      %s43 = sadd.s32 1, %s36
      %p44 = scmp.ge.s32.totalorder %s43, 1
      %s45 = scalar_select %p44, 0, %s43
      %s46 = sadd.s32 1, %s35
      %s47 = scalar_select %p44, %s46, %s35
      %p48 = scmp.ge.s32.totalorder %s47, 1
      %s49 = scalar_select %p48, 0, %s47
      %s50 = sadd.s32 1, %s34
      %s51 = scalar_select %p48, %s50, %s34
      %p52 = scmp.ge.s32.totalorder %s51, 2
      %s53 = scalar_select %p52, 0, %s51
      %s54 = ssub.s32 %s34, %s53
      %s55 = ssub.s32 %s35, %s49
      %s56 = sor.u32 %s54, %s55
      %s57 = ssub.s32 %s36, %s45
      %s58 = sor.u32 %s56, %s57
      %p59 = scmp.eq.s32.totalorder %s58, 0
      %s61 = sadd.s32 %s60, 1
      %s62 = scalar_select %p59, %s60, %s61
      %p65 = pneg %p59
      %p66 = scmp.eq.s32.totalorder %s27, 1
      %p67 = por %p65, %p66
      %p68 = scmp.ne.s32.totalorder %s60, %s63
      %p69 = scmp.eq.s32.totalorder %s27, 0
      %p70 = por %p68, %p69
      %p71 = scmp.ne.s32.totalorder %s60, %s63
      %p72 = scmp.eq.s32.totalorder %s32, 1
      %p73 = por %p71, %p72
      %p74 = scmp.ne.s32.totalorder %s63, %s64
      %p75 = scmp.eq.s32.totalorder %s32, 0
      %p76 = por %p74, %p75
      %p77 = scmp.ne.s32.totalorder %s63, %s64
      %p78 = scmp.eq.s32.totalorder %s33, 1
      %p79 = por %p77, %p78
      %p81 = scmp.ne.s32.totalorder %s64, %s80
      %p82 = scmp.eq.s32.totalorder %s33, 0
      %p83 = por %p81, %p82
      %s84 = ssub.s32 %s34, %s53
      %s85 = ssub.s32 %s35, %s49
      %s86 = sor.u32 %s84, %s85
      %p87 = scmp.eq.s32.totalorder %s86, 0
      %s89 = sadd.s32 %s88, 1
      %s90 = scalar_select %p87, %s88, %s89
      %p93 = pneg %p87
      %p94 = scmp.eq.s32.totalorder %s27, 1
      %p95 = por %p93, %p94
      %p96 = scmp.ne.s32.totalorder %s88, %s91
      %p97 = scmp.eq.s32.totalorder %s27, 0
      %p98 = por %p96, %p97
      %p99 = scmp.ne.s32.totalorder %s88, %s91
      %p100 = scmp.eq.s32.totalorder %s32, 1
      %p101 = por %p99, %p100
      %p102 = scmp.ne.s32.totalorder %s91, %s92
      %p103 = scmp.eq.s32.totalorder %s32, 0
      %p104 = por %p102, %p103
      %p105 = scmp.ne.s32.totalorder %s91, %s92
      %p106 = scmp.eq.s32.totalorder %s33, 1
      %p107 = por %p105, %p106
      %p109 = scmp.ne.s32.totalorder %s92, %s108
      %p110 = scmp.eq.s32.totalorder %s33, 0
      %p111 = por %p109, %p110
      %s112 = ssub.s32 %s34, %s53
      %s113 = ssub.s32 %s35, %s49
      %s114 = sor.u32 %s112, %s113
      %p115 = scmp.eq.s32.totalorder %s114, 0
      %s117 = sadd.s32 %s116, 1
      %s118 = scalar_select %p115, %s116, %s117
      %p121 = pneg %p115
      %p122 = scmp.eq.s32.totalorder %s27, 1
      %p123 = por %p121, %p122
      %p124 = scmp.ne.s32.totalorder %s116, %s119
      %p125 = scmp.eq.s32.totalorder %s27, 0
      %p126 = por %p124, %p125
      %p127 = scmp.ne.s32.totalorder %s116, %s119
      %p128 = scmp.eq.s32.totalorder %s32, 1
      %p129 = por %p127, %p128
      %p130 = scmp.ne.s32.totalorder %s119, %s120
      %p131 = scmp.eq.s32.totalorder %s32, 0
      %p132 = por %p130, %p131
      %p133 = scmp.ne.s32.totalorder %s119, %s120
      %p134 = scmp.eq.s32.totalorder %s33, 1
      %p135 = por %p133, %p134
      %p137 = scmp.ne.s32.totalorder %s120, %s136
      %p138 = scmp.eq.s32.totalorder %s33, 0
      %p139 = por %p137, %p138
      %s140 = ssub.s32 %s34, %s53
      %s141 = ssub.s32 %s36, %s45
      %s142 = sor.u32 %s140, %s141
      %p143 = scmp.eq.s32.totalorder %s142, 0
      %s145 = sadd.s32 %s144, 1
      %s146 = scalar_select %p143, %s144, %s145
      %p149 = pneg %p143
      %p150 = scmp.eq.s32.totalorder %s27, 1
      %p151 = por %p149, %p150
      %p152 = scmp.ne.s32.totalorder %s144, %s147
      %p153 = scmp.eq.s32.totalorder %s27, 0
      %p154 = por %p152, %p153
      %p155 = scmp.ne.s32.totalorder %s144, %s147
      %p156 = scmp.eq.s32.totalorder %s32, 1
      %p157 = por %p155, %p156
      %p158 = scmp.ne.s32.totalorder %s147, %s148
      %p159 = scmp.eq.s32.totalorder %s32, 0
      %p160 = por %p158, %p159
      %p161 = scmp.ne.s32.totalorder %s147, %s148
      %p162 = scmp.eq.s32.totalorder %s33, 1
      %p163 = por %p161, %p162
      %p165 = scmp.ne.s32.totalorder %s148, %s164
      %p166 = scmp.eq.s32.totalorder %s33, 0
      %p167 = por %p165, %p166
      %s168 = ssub.s32 %s34, %s53
      %s169 = ssub.s32 %s35, %s49
      %s170 = sor.u32 %s168, %s169
      %s171 = ssub.s32 %s36, %s45
      %s172 = sor.u32 %s170, %s171
      %p173 = scmp.eq.s32.totalorder %s172, 0
      %s175 = sadd.s32 %s174, 1
      %s176 = scalar_select %p173, %s174, %s175
      %p179 = pneg %p173
      %p180 = scmp.eq.s32.totalorder %s27, 1
      %p181 = por %p179, %p180
      %p182 = scmp.ne.s32.totalorder %s174, %s177
      %p183 = scmp.eq.s32.totalorder %s27, 0
      %p184 = por %p182, %p183
      %p185 = scmp.ne.s32.totalorder %s174, %s177
      %p186 = scmp.eq.s32.totalorder %s32, 1
      %p187 = por %p185, %p186
      %p188 = scmp.ne.s32.totalorder %s177, %s178
      %p189 = scmp.eq.s32.totalorder %s32, 0
      %p190 = por %p188, %p189
      %p191 = scmp.ne.s32.totalorder %s177, %s178
      %p192 = scmp.eq.s32.totalorder %s33, 1
      %p193 = por %p191, %p192
      %p195 = scmp.ne.s32.totalorder %s178, %s194
      %p196 = scmp.eq.s32.totalorder %s33, 0
      %p197 = por %p195, %p196
      %s198 = ssub.s32 %s34, %s53
      %s199 = ssub.s32 %s35, %s49
      %s200 = sor.u32 %s198, %s199
      %s201 = ssub.s32 %s36, %s45
      %s202 = sor.u32 %s200, %s201
      %p203 = scmp.eq.s32.totalorder %s202, 0
      %s205 = sadd.s32 %s204, 1
      %s206 = scalar_select %p203, %s204, %s205
      %p209 = pneg %p203
      %p210 = scmp.eq.s32.totalorder %s27, 1
      %p211 = por %p209, %p210
      %p212 = scmp.ne.s32.totalorder %s204, %s207
      %p213 = scmp.eq.s32.totalorder %s27, 0
      %p214 = por %p212, %p213
      %p215 = scmp.ne.s32.totalorder %s204, %s207
      %p216 = scmp.eq.s32.totalorder %s32, 1
      %p217 = por %p215, %p216
      %p218 = scmp.ne.s32.totalorder %s207, %s208
      %p219 = scmp.eq.s32.totalorder %s32, 0
      %p220 = por %p218, %p219
      %p221 = scmp.ne.s32.totalorder %s207, %s208
      %p222 = scmp.eq.s32.totalorder %s33, 1
      %p223 = por %p221, %p222
      %p225 = scmp.ne.s32.totalorder %s208, %s224
      %p226 = scmp.eq.s32.totalorder %s33, 0
      %p227 = por %p225, %p226
      %p228 = scmp.le.s32.totalorder 1, %s27
      %p229 = scmp.lt.s32.totalorder %s27, 3
      %p230 = pnand %p228, %p229
      %p231 = pneg %p230
      // Predicated region
      $region9: #{tpu_custom_call.1} parent=5 // pred_check
        _
      $region10: #{tpu_custom_call.1} parent=5 // pred_check_branch
        %233 = sbr.rel (%p230) target = $region12
      $region11: #{tpu_custom_call.1} parent=5 // pred_region
        %s234 = ssub.s32 %s27, 1
      $region12: #{tpu_custom_call.1} parent=5 // pred_fallthru
        _
      %p235 = scmp.lt.s32.totalorder %s27, 2
      // Predicated region
      $region13: #{tpu_custom_call.1} parent=5 // pred_check
        %p236 = pneg %p235
      $region14: #{tpu_custom_call.1} parent=5 // pred_check_branch
        %238 = sbr.rel (%p236) target = $region16
      $region15: #{tpu_custom_call.1} parent=5 // pred_region
        // Predicated region
        $region17: #{tpu_custom_call.1} parent=15 // pred_check
          %p239 = pneg %p70
        $region18: #{tpu_custom_call.1} parent=15 // pred_check_branch
          %241 = sbr.rel (%p239) target = $region20
        $region19: #{tpu_custom_call.1} parent=15 // pred_region
          %s242 = sand.u32 %s60, 1
          %s243 = scalar_lea.sflag [#allocation3], %s242
          %s244 = sand.u32 %s60, 1
          %s245 = smul.addr %s244, 16
          %s246 = scalar_lea.vmem [#allocation2], %s245
          %s247 = smul.u32 2, %s35
          %s249 = ssub.s32 256, 256
          %250 = vsyncadd %s243, %s249
          %s251 = sadd.s32 %s36, %s247
          %s252 = smul.addr %s34, 2
          %s253 = sadd.s32 %s251, %s252
          %s254 = smul.addr %s253, 128
          %s255 = scalar_lea.hbm %s0, %s254
          %s256 = sshll.u32 %s246, 4
          %s257 = int_to_ptr.vmem [resolvable:$true] %s256
          %262 = dma.hbm_to_vmem [thread:$0]  %s255, 256, %s257, %s243, 128, 128, 8
        $region20: #{tpu_custom_call.1} parent=15 // pred_fallthru
          _
        // Predicated region
        $region21: #{tpu_custom_call.1} parent=15 // pred_check
          %p263 = pneg %p98
        $region22: #{tpu_custom_call.1} parent=15 // pred_check_branch
          %265 = sbr.rel (%p263) target = $region24
        $region23: #{tpu_custom_call.1} parent=15 // pred_region
          %s266 = sand.u32 %s27, 1
          %s267 = scalar_lea.sflag [#allocation6], %s266
          %s268 = sand.u32 %s88, 1
          %s269 = smul.addr %s268, 16
          %s270 = scalar_lea.vmem [#allocation5], %s269
          %s271 = smul.u32 2, %s35
          %s273 = ssub.s32 256, 256
          %274 = vsyncadd %s267, %s273
          %s275 = smul.addr %s34, 2
          %s276 = sadd.s32 %s271, %s275
          %s277 = smul.addr %s276, 128
          %s278 = scalar_lea.hbm %s1, %s277
          %s279 = sshll.u32 %s270, 4
          %s280 = int_to_ptr.vmem [resolvable:$true] %s279
          %285 = dma.hbm_to_vmem [thread:$0]  %s278, 256, %s280, %s267, 128, 128, 8
        $region24: #{tpu_custom_call.1} parent=15 // pred_fallthru
          _
        // Predicated region
        $region25: #{tpu_custom_call.1} parent=15 // pred_check
          %p286 = pneg %p126
        $region26: #{tpu_custom_call.1} parent=15 // pred_check_branch
          %288 = sbr.rel (%p286) target = $region28
        $region27: #{tpu_custom_call.1} parent=15 // pred_region
          %s289 = sand.u32 %s27, 1
          %s290 = scalar_lea.sflag [#allocation6], %s289
          %s291 = sand.u32 %s116, 1
          %s292 = smul.addr %s291, 16
          %s293 = scalar_lea.vmem [#allocation7], %s292
          %s294 = smul.u32 2, %s35
          %s296 = ssub.s32 256, 256
          %297 = vsyncadd %s290, %s296
          %s298 = smul.addr %s34, 2
          %s299 = sadd.s32 %s294, %s298
          %s300 = smul.addr %s299, 128
          %s301 = scalar_lea.hbm %s2, %s300
          %s302 = sshll.u32 %s293, 4
          %s303 = int_to_ptr.vmem [resolvable:$true] %s302
          %308 = dma.hbm_to_vmem [thread:$0]  %s301, 256, %s303, %s290, 128, 128, 8
        $region28: #{tpu_custom_call.1} parent=15 // pred_fallthru
          _
        // Predicated region
        $region29: #{tpu_custom_call.1} parent=15 // pred_check
          %p309 = pneg %p154
        $region30: #{tpu_custom_call.1} parent=15 // pred_check_branch
          %311 = sbr.rel (%p309) target = $region32
        $region31: #{tpu_custom_call.1} parent=15 // pred_region
          %s312 = sand.u32 %s144, 1
          %s313 = scalar_lea.sflag [#allocation9], %s312
          %s314 = sand.u32 %s144, 1
          %s315 = smul.addr %s314, 8
          %s316 = scalar_lea.vmem [#allocation8], %s315
          %s318 = ssub.s32 128, 128
          %319 = vsyncadd %s313, %s318
          %s320 = sadd.s32 %s36, %s34
          %s321 = smul.addr %s320, 128
          %s322 = scalar_lea.hbm %s3, %s321
          %s324 = sshll.u32 %s316, 4
          %s325 = int_to_ptr.vmem [resolvable:$true] %s324
          %327 = dma.hbm_to_vmem [thread:$0]  %s322, 128, %s325, %s313
        $region32: #{tpu_custom_call.1} parent=15 // pred_fallthru
          _
      $region16: #{tpu_custom_call.1} parent=5 // pred_fallthru
        _
      %p328 = scmp.le.s32.totalorder 1, %s27
      %p329 = scmp.lt.s32.totalorder %s27, 3
      %p330 = pnand %p328, %p329
      %p331 = pneg %p330
      // Predicated region
      $region33: #{tpu_custom_call.1} parent=5 // pred_check
        _
      $region34: #{tpu_custom_call.1} parent=5 // pred_check_branch
        %333 = sbr.rel (%p330) target = $region36
      $region35: #{tpu_custom_call.1} parent=5 // pred_region
        %s334 = ssub.s32 %s27, 1
        %s335 = sand.u32 %s63, 1
        %s336 = scalar_lea.sflag [#allocation3], %s335
        %s337 = sand.u32 %s63, 1
        %s338 = smul.addr %s337, 16
        %s339 = scalar_lea.vmem [#allocation2], %s338
        // Predicated region
        $region37: #{tpu_custom_call.1} parent=35 // pred_check
          %p340 = pneg %p76
        $region38: #{tpu_custom_call.1} parent=35 // pred_check_branch
          %342 = sbr.rel (%p340) target = $region40
        $region39: #{tpu_custom_call.1} parent=35 // pred_region
          %343 = dma.done %s336, 256
        $region40: #{tpu_custom_call.1} parent=35 // pred_fallthru
          _
        %s344 = sand.u32 %s32, 1
        %s345 = scalar_lea.sflag [#allocation6], %s344
        %s346 = sand.u32 %s91, 1
        %s347 = smul.addr %s346, 16
        %s348 = scalar_lea.vmem [#allocation5], %s347
        // Predicated region
        $region41: #{tpu_custom_call.1} parent=35 // pred_check
          %p349 = pneg %p104
        $region42: #{tpu_custom_call.1} parent=35 // pred_check_branch
          %351 = sbr.rel (%p349) target = $region44
        $region43: #{tpu_custom_call.1} parent=35 // pred_region
          %352 = dma.done %s345, 256
        $region44: #{tpu_custom_call.1} parent=35 // pred_fallthru
          _
        %s353 = sand.u32 %s32, 1
        %s354 = scalar_lea.sflag [#allocation6], %s353
        %s355 = sand.u32 %s119, 1
        %s356 = smul.addr %s355, 16
        %s357 = scalar_lea.vmem [#allocation7], %s356
        // Predicated region
        $region45: #{tpu_custom_call.1} parent=35 // pred_check
          %p358 = pneg %p132
        $region46: #{tpu_custom_call.1} parent=35 // pred_check_branch
          %360 = sbr.rel (%p358) target = $region48
        $region47: #{tpu_custom_call.1} parent=35 // pred_region
          %361 = dma.done %s354, 256
        $region48: #{tpu_custom_call.1} parent=35 // pred_fallthru
          _
        %s362 = sand.u32 %s147, 1
        %s363 = scalar_lea.sflag [#allocation9], %s362
        %s364 = sand.u32 %s147, 1
        %s365 = smul.addr %s364, 8
        %s366 = scalar_lea.vmem [#allocation8], %s365
        // Predicated region
        $region49: #{tpu_custom_call.1} parent=35 // pred_check
          %p367 = pneg %p160
        $region50: #{tpu_custom_call.1} parent=35 // pred_check_branch
          %369 = sbr.rel (%p367) target = $region52
        $region51: #{tpu_custom_call.1} parent=35 // pred_region
          %370 = dma.done %s363, 128
        $region52: #{tpu_custom_call.1} parent=35 // pred_fallthru
          _
        %s371 = sand.u32 %s63, 1
        %s372 = scalar_lea.sflag [#allocation3], %s371
        %s373 = sand.u32 %s63, 1
        %s374 = smul.addr %s373, 16
        %s375 = scalar_lea.vmem [#allocation2], %s374
        %p376 = pneg %p76
        %p377 = pneg %p73
        %s378 = sand.u32 %s32, 1
        %s379 = scalar_lea.sflag [#allocation6], %s378
        %s380 = sand.u32 %s91, 1
        %s381 = smul.addr %s380, 16
        %s382 = scalar_lea.vmem [#allocation5], %s381
        %p383 = pneg %p104
        %p384 = pneg %p101
        %s385 = sand.u32 %s32, 1
        %s386 = scalar_lea.sflag [#allocation6], %s385
        %s387 = sand.u32 %s119, 1
        %s388 = smul.addr %s387, 16
        %s389 = scalar_lea.vmem [#allocation7], %s388
        %p390 = pneg %p132
        %p391 = pneg %p129
        %s392 = sand.u32 %s147, 1
        %s393 = scalar_lea.sflag [#allocation9], %s392
        %s394 = sand.u32 %s147, 1
        %s395 = smul.addr %s394, 8
        %s396 = scalar_lea.vmem [#allocation8], %s395
        %p397 = pneg %p160
        %p398 = pneg %p157
        %p399 = pneg %p190
        %p400 = pneg %p187
        %s401 = sand.u32 %s177, 1
        %s402 = scalar_lea.sflag [#allocation4], %s401
        %s403 = sand.u32 %s177, 1
        %s404 = smul.addr %s403, 16
        %s405 = scalar_lea.vmem [#allocation10], %s404
        %p406 = pneg %p220
        %p407 = pneg %p217
        %s408 = sand.u32 %s207, 1
        %s409 = scalar_lea.sflag [#allocation12], %s408
        %s410 = sand.u32 %s207, 1
        %s411 = smul.addr %s410, 16
        %s412 = scalar_lea.vmem [#allocation11], %s411
        %s413 = smul.u32 2, %s38
        %s414 = smul.u32 2, %s38
        %s415 = smul.u32 2, %s38
        %s416 = smul.u32 2, %s38
        %s417 = smul.u32 2, %s38
        %v418 = vld [vmem:[%s366] sm:$0xff]
        %vm419 = vcmp.ne.s32.totalorder %v418, 0
        %v420 = vld [vmem:[%s339] sm:$0xff]
        %v421 = vmul.f32 %v420, 0.25
        %v422 = vld [vmem:[%s348] sm:$0xff]
        %v423 = vld [vmem:[%s357] sm:$0xff]
        %vm424 = vcmask 130048
        %v426 = vsel %vm424, %v421, 0
        %v429 = vsel %vm424, %v422, 0
        %431 = vmatprep.subr.mxu0 0.0
        %432 = vmatpush1.xpose.msra.mxu0 %v429
        %433 = vmatprep.subr.mxu0 0.0
        %434 = vmatpush1.xpose.msra.mxu0 0.0
        %435 = vmatprep.subr.mxu0 0.0
        %436 = vmatpush1.xpose.msra.mxu0 0.0
        %437 = vmatprep.subr.mxu0 0.0
        %438 = vmatpush1.xpose.msra.mxu0 0.0
        %439 = vmatprep.subr.mxu0 0.0
        %440 = vmatpush1.xpose.msra.mxu0 0.0
        %441 = vmatprep.subr.mxu0 0.0
        %442 = vmatpush1.xpose.msra.mxu0 0.0
        %443 = vmatprep.subr.mxu0 0.0
        %444 = vmatpush1.xpose.msra.mxu0 0.0
        %445 = vmatprep.subr.mxu0 0.0
        %446 = vmatpush1.xpose.msra.mxu0 0.0
        %447 = vmatprep.subr.mxu0 0.0
        %448 = vmatpush1.xpose.msra.mxu0 0.0
        %449 = vmatprep.subr.mxu0 0.0
        %450 = vmatpush1.xpose.msra.mxu0 0.0
        %451 = vmatprep.subr.mxu0 0.0
        %452 = vmatpush1.xpose.msra.mxu0 0.0
        %453 = vmatprep.subr.mxu0 0.0
        %454 = vmatpush1.xpose.msra.mxu0 0.0
        %455 = vmatprep.subr.mxu0 0.0
        %456 = vmatpush1.xpose.msra.mxu0 0.0
        %457 = vmatprep.subr.mxu0 0.0
        %458 = vmatpush1.xpose.msra.mxu0 0.0
        %459 = vmatprep.subr.mxu0 0.0
        %460 = vmatpush1.xpose.msra.mxu0 0.0
        %461 = vmatprep.subr.mxu0 0.0
        %462 = vmatpush1.xpose.msra.mxu0 0.0
        %463 = vmatprep.subr.mxu0 0.0
        %464 = vmatpush1.xpose.msra.mxu0 0.0
        %465 = vmatprep.subr.mxu0 0.0
        %466 = vmatpush1.xpose.msra.mxu0 0.0
        %467 = vmatprep.subr.mxu0 0.0
        %468 = vmatpush1.xpose.msra.mxu0 0.0
        %469 = vmatprep.subr.mxu0 0.0
        %470 = vmatpush1.xpose.msra.mxu0 0.0
        %471 = vmatprep.subr.mxu0 0.0
        %472 = vmatpush1.xpose.msra.mxu0 0.0
        %473 = vmatprep.subr.mxu0 0.0
        %474 = vmatpush1.xpose.msra.mxu0 0.0
        %475 = vmatprep.subr.mxu0 0.0
        %476 = vmatpush1.xpose.msra.mxu0 0.0
        %477 = vmatprep.subr.mxu0 0.0
        %478 = vmatpush1.xpose.msra.mxu0 0.0
        %479 = vmatprep.subr.mxu0 0.0
        %480 = vmatpush1.xpose.msra.mxu0 0.0
        %481 = vmatprep.subr.mxu0 0.0
        %482 = vmatpush1.xpose.msra.mxu0 0.0
        %483 = vmatprep.subr.mxu0 0.0
        %484 = vmatpush1.xpose.msra.mxu0 0.0
        %485 = vmatprep.subr.mxu0 0.0
        %486 = vmatpush1.xpose.msra.mxu0 0.0
        %487 = vmatprep.subr.mxu0 0.0
        %488 = vmatpush1.xpose.msra.mxu0 0.0
        %489 = vmatprep.subr.mxu0 0.0
        %490 = vmatpush1.xpose.msra.mxu0 0.0
        %491 = vmatprep.subr.mxu0 0.0
        %492 = vmatpush1.xpose.msra.mxu0 0.0
        %493 = vmatprep.subr.mxu0 0.0
        %494 = vmatpush1.xpose.msra.mxu0 0.0
        %495 = vmatprep.mubr.f32.mxu0 0.0
        %496 = vmatmul.mubr.f32.gmra.mrb[0].mxu0 %v426
        %v497 = vpop.f32.mrb[0].mxu0
        %v498 = vadd.f32 0.0, %v497
        %v499 = vpop.f32.mrb[0].mxu0
        %500 = vdwg.mxu0
        %v501 = vsel %vm419, %v498, -1000000.0
        %vm502 = vcmask 64512
        %v503 = vsel %vm502, %v501, -inf
        %504 = vmax.xlane.f32.xlu0 %v503
        %v505 = vpop.xlane.xlu0 %504
        %v506 = vsub.f32 %v501, %v505
        %v507 = vmul.f32 %v506, 1.442695
        %v508 = vpow.pop %v507
        %v509 = vsel %vm502, %v508, 0.0
        %510 = vadd.xlane.f32.xlu0 %v509
        %v511 = vpop.xlane.xlu0 %510
        %v512 = vrcp.pop %v511
        %v513 = vmul.f32 %v508, %v512
        %514 = vst.msk [vmem:[%s412] sm:$0xff] %vm502, %v513
        %v516 = vsel %vm502, %v513, 0
        %518 = vmatprep.subr.mxu0 0.0
        %519 = vmatpush1.msra.mxu0 %v423
        %520 = vmatprep.subr.mxu0 0.0
        %521 = vmatpush1.msra.mxu0 0.0
        %522 = vmatprep.subr.mxu0 0.0
        %523 = vmatpush1.msra.mxu0 0.0
        %524 = vmatprep.subr.mxu0 0.0
        %525 = vmatpush1.msra.mxu0 0.0
        %526 = vmatprep.subr.mxu0 0.0
        %527 = vmatpush1.msra.mxu0 0.0
        %528 = vmatprep.subr.mxu0 0.0
        %529 = vmatpush1.msra.mxu0 0.0
        %530 = vmatprep.subr.mxu0 0.0
        %531 = vmatpush1.msra.mxu0 0.0
        %532 = vmatprep.subr.mxu0 0.0
        %533 = vmatpush1.msra.mxu0 0.0
        %534 = vmatprep.subr.mxu0 0.0
        %535 = vmatpush1.msra.mxu0 0.0
        %536 = vmatprep.subr.mxu0 0.0
        %537 = vmatpush1.msra.mxu0 0.0
        %538 = vmatprep.subr.mxu0 0.0
        %539 = vmatpush1.msra.mxu0 0.0
        %540 = vmatprep.subr.mxu0 0.0
        %541 = vmatpush1.msra.mxu0 0.0
        %542 = vmatprep.subr.mxu0 0.0
        %543 = vmatpush1.msra.mxu0 0.0
        %544 = vmatprep.subr.mxu0 0.0
        %545 = vmatpush1.msra.mxu0 0.0
        %546 = vmatprep.subr.mxu0 0.0
        %547 = vmatpush1.msra.mxu0 0.0
        %548 = vmatprep.subr.mxu0 0.0
        %549 = vmatpush1.msra.mxu0 0.0
        %550 = vmatprep.subr.mxu0 0.0
        %551 = vmatpush1.msra.mxu0 0.0
        %552 = vmatprep.subr.mxu0 0.0
        %553 = vmatpush1.msra.mxu0 0.0
        %554 = vmatprep.subr.mxu0 0.0
        %555 = vmatpush1.msra.mxu0 0.0
        %556 = vmatprep.subr.mxu0 0.0
        %557 = vmatpush1.msra.mxu0 0.0
        %558 = vmatprep.subr.mxu0 0.0
        %559 = vmatpush1.msra.mxu0 0.0
        %560 = vmatprep.subr.mxu0 0.0
        %561 = vmatpush1.msra.mxu0 0.0
        %562 = vmatprep.subr.mxu0 0.0
        %563 = vmatpush1.msra.mxu0 0.0
        %564 = vmatprep.subr.mxu0 0.0
        %565 = vmatpush1.msra.mxu0 0.0
        %566 = vmatprep.subr.mxu0 0.0
        %567 = vmatpush1.msra.mxu0 0.0
        %568 = vmatprep.subr.mxu0 0.0
        %569 = vmatpush1.msra.mxu0 0.0
        %570 = vmatprep.subr.mxu0 0.0
        %571 = vmatpush1.msra.mxu0 0.0
        %572 = vmatprep.subr.mxu0 0.0
        %573 = vmatpush1.msra.mxu0 0.0
        %574 = vmatprep.subr.mxu0 0.0
        %575 = vmatpush1.msra.mxu0 0.0
        %576 = vmatprep.subr.mxu0 0.0
        %577 = vmatpush1.msra.mxu0 0.0
        %578 = vmatprep.subr.mxu0 0.0
        %579 = vmatpush1.msra.mxu0 0.0
        %580 = vmatprep.subr.mxu0 0.0
        %581 = vmatpush1.msra.mxu0 0.0
        %582 = vmatprep.mubr.f32.mxu0 0.0
        %583 = vmatmul.mubr.f32.gmra.mrb[0].mxu0 %v516
        %v584 = vpop.f32.mrb[0].mxu0
        %v585 = vadd.f32 0.0, %v584
        %v586 = vpop.f32.mrb[0].mxu0
        %587 = vdwg.mxu0
        %588 = vst.msk [vmem:[%s405] sm:$0xff] %vm424, %v585
        %s589 = scalar_lea.vmem %s339, 8 [#allocation2]
        %v590 = vld [vmem:[%s589] sm:$0xff]
        %v591 = vmul.f32 %v590, 0.25
        %s592 = scalar_lea.vmem %s348, 8 [#allocation5]
        %v593 = vld [vmem:[%s592] sm:$0xff]
        %s594 = scalar_lea.vmem %s357, 8 [#allocation7]
        %v595 = vld [vmem:[%s594] sm:$0xff]
        %v597 = vsel %vm424, %v591, 0
        %v600 = vsel %vm424, %v593, 0
        %602 = vmatprep.subr.mxu0 0.0
        %603 = vmatpush1.xpose.msra.mxu0 %v600
        %604 = vmatprep.subr.mxu0 0.0
        %605 = vmatpush1.xpose.msra.mxu0 0.0
        %606 = vmatprep.subr.mxu0 0.0
        %607 = vmatpush1.xpose.msra.mxu0 0.0
        %608 = vmatprep.subr.mxu0 0.0
        %609 = vmatpush1.xpose.msra.mxu0 0.0
        %610 = vmatprep.subr.mxu0 0.0
        %611 = vmatpush1.xpose.msra.mxu0 0.0
        %612 = vmatprep.subr.mxu0 0.0
        %613 = vmatpush1.xpose.msra.mxu0 0.0
        %614 = vmatprep.subr.mxu0 0.0
        %615 = vmatpush1.xpose.msra.mxu0 0.0
        %616 = vmatprep.subr.mxu0 0.0
        %617 = vmatpush1.xpose.msra.mxu0 0.0
        %618 = vmatprep.subr.mxu0 0.0
        %619 = vmatpush1.xpose.msra.mxu0 0.0
        %620 = vmatprep.subr.mxu0 0.0
        %621 = vmatpush1.xpose.msra.mxu0 0.0
        %622 = vmatprep.subr.mxu0 0.0
        %623 = vmatpush1.xpose.msra.mxu0 0.0
        %624 = vmatprep.subr.mxu0 0.0
        %625 = vmatpush1.xpose.msra.mxu0 0.0
        %626 = vmatprep.subr.mxu0 0.0
        %627 = vmatpush1.xpose.msra.mxu0 0.0
        %628 = vmatprep.subr.mxu0 0.0
        %629 = vmatpush1.xpose.msra.mxu0 0.0
        %630 = vmatprep.subr.mxu0 0.0
        %631 = vmatpush1.xpose.msra.mxu0 0.0
        %632 = vmatprep.subr.mxu0 0.0
        %633 = vmatpush1.xpose.msra.mxu0 0.0
        %634 = vmatprep.subr.mxu0 0.0
        %635 = vmatpush1.xpose.msra.mxu0 0.0
        %636 = vmatprep.subr.mxu0 0.0
        %637 = vmatpush1.xpose.msra.mxu0 0.0
        %638 = vmatprep.subr.mxu0 0.0
        %639 = vmatpush1.xpose.msra.mxu0 0.0
        %640 = vmatprep.subr.mxu0 0.0
        %641 = vmatpush1.xpose.msra.mxu0 0.0
        %642 = vmatprep.subr.mxu0 0.0
        %643 = vmatpush1.xpose.msra.mxu0 0.0
        %644 = vmatprep.subr.mxu0 0.0
        %645 = vmatpush1.xpose.msra.mxu0 0.0
        %646 = vmatprep.subr.mxu0 0.0
        %647 = vmatpush1.xpose.msra.mxu0 0.0
        %648 = vmatprep.subr.mxu0 0.0
        %649 = vmatpush1.xpose.msra.mxu0 0.0
        %650 = vmatprep.subr.mxu0 0.0
        %651 = vmatpush1.xpose.msra.mxu0 0.0
        %652 = vmatprep.subr.mxu0 0.0
        %653 = vmatpush1.xpose.msra.mxu0 0.0
        %654 = vmatprep.subr.mxu0 0.0
        %655 = vmatpush1.xpose.msra.mxu0 0.0
        %656 = vmatprep.subr.mxu0 0.0
        %657 = vmatpush1.xpose.msra.mxu0 0.0
        %658 = vmatprep.subr.mxu0 0.0
        %659 = vmatpush1.xpose.msra.mxu0 0.0
        %660 = vmatprep.subr.mxu0 0.0
        %661 = vmatpush1.xpose.msra.mxu0 0.0
        %662 = vmatprep.subr.mxu0 0.0
        %663 = vmatpush1.xpose.msra.mxu0 0.0
        %664 = vmatprep.subr.mxu0 0.0
        %665 = vmatpush1.xpose.msra.mxu0 0.0
        %666 = vmatprep.mubr.f32.mxu0 0.0
        %667 = vmatmul.mubr.f32.gmra.mrb[0].mxu0 %v597
        %v668 = vpop.f32.mrb[0].mxu0
        %v669 = vadd.f32 0.0, %v668
        %v670 = vpop.f32.mrb[0].mxu0
        %671 = vdwg.mxu0
        %v672 = vsel %vm419, %v669, -1000000.0
        %v673 = vsel %vm502, %v672, -inf
        %674 = vmax.xlane.f32.xlu0 %v673
        %v675 = vpop.xlane.xlu0 %674
        %v676 = vsub.f32 %v672, %v675
        %v677 = vmul.f32 %v676, 1.442695
        %v678 = vpow.pop %v677
        %v679 = vsel %vm502, %v678, 0.0
        %680 = vadd.xlane.f32.xlu0 %v679
        %v681 = vpop.xlane.xlu0 %680
        %v682 = vrcp.pop %v681
        %v683 = vmul.f32 %v678, %v682
        %s684 = scalar_lea.vmem %s412, 8 [#allocation11]
        %685 = vst.msk [vmem:[%s684] sm:$0xff] %vm502, %v683
        %v687 = vsel %vm502, %v683, 0
        %689 = vmatprep.subr.mxu0 0.0
        %690 = vmatpush1.msra.mxu0 %v595
        %691 = vmatprep.subr.mxu0 0.0
        %692 = vmatpush1.msra.mxu0 0.0
        %693 = vmatprep.subr.mxu0 0.0
        %694 = vmatpush1.msra.mxu0 0.0
        %695 = vmatprep.subr.mxu0 0.0
        %696 = vmatpush1.msra.mxu0 0.0
        %697 = vmatprep.subr.mxu0 0.0
        %698 = vmatpush1.msra.mxu0 0.0
        %699 = vmatprep.subr.mxu0 0.0
        %700 = vmatpush1.msra.mxu0 0.0
        %701 = vmatprep.subr.mxu0 0.0
        %702 = vmatpush1.msra.mxu0 0.0
        %703 = vmatprep.subr.mxu0 0.0
        %704 = vmatpush1.msra.mxu0 0.0
        %705 = vmatprep.subr.mxu0 0.0
        %706 = vmatpush1.msra.mxu0 0.0
        %707 = vmatprep.subr.mxu0 0.0
        %708 = vmatpush1.msra.mxu0 0.0
        %709 = vmatprep.subr.mxu0 0.0
        %710 = vmatpush1.msra.mxu0 0.0
        %711 = vmatprep.subr.mxu0 0.0
        %712 = vmatpush1.msra.mxu0 0.0
        %713 = vmatprep.subr.mxu0 0.0
        %714 = vmatpush1.msra.mxu0 0.0
        %715 = vmatprep.subr.mxu0 0.0
        %716 = vmatpush1.msra.mxu0 0.0
        %717 = vmatprep.subr.mxu0 0.0
        %718 = vmatpush1.msra.mxu0 0.0
        %719 = vmatprep.subr.mxu0 0.0
        %720 = vmatpush1.msra.mxu0 0.0
        %721 = vmatprep.subr.mxu0 0.0
        %722 = vmatpush1.msra.mxu0 0.0
        %723 = vmatprep.subr.mxu0 0.0
        %724 = vmatpush1.msra.mxu0 0.0
        %725 = vmatprep.subr.mxu0 0.0
        %726 = vmatpush1.msra.mxu0 0.0
        %727 = vmatprep.subr.mxu0 0.0
        %728 = vmatpush1.msra.mxu0 0.0
        %729 = vmatprep.subr.mxu0 0.0
        %730 = vmatpush1.msra.mxu0 0.0
        %731 = vmatprep.subr.mxu0 0.0
        %732 = vmatpush1.msra.mxu0 0.0
        %733 = vmatprep.subr.mxu0 0.0
        %734 = vmatpush1.msra.mxu0 0.0
        %735 = vmatprep.subr.mxu0 0.0
        %736 = vmatpush1.msra.mxu0 0.0
        %737 = vmatprep.subr.mxu0 0.0
        %738 = vmatpush1.msra.mxu0 0.0
        %739 = vmatprep.subr.mxu0 0.0
        %740 = vmatpush1.msra.mxu0 0.0
        %741 = vmatprep.subr.mxu0 0.0
        %742 = vmatpush1.msra.mxu0 0.0
        %743 = vmatprep.subr.mxu0 0.0
        %744 = vmatpush1.msra.mxu0 0.0
        %745 = vmatprep.subr.mxu0 0.0
        %746 = vmatpush1.msra.mxu0 0.0
        %747 = vmatprep.subr.mxu0 0.0
        %748 = vmatpush1.msra.mxu0 0.0
        %749 = vmatprep.subr.mxu0 0.0
        %750 = vmatpush1.msra.mxu0 0.0
        %751 = vmatprep.subr.mxu0 0.0
        %752 = vmatpush1.msra.mxu0 0.0
        %753 = vmatprep.mubr.f32.mxu0 0.0
        %754 = vmatmul.mubr.f32.gmra.mrb[0].mxu0 %v687
        %v755 = vpop.f32.mrb[0].mxu0
        %v756 = vadd.f32 0.0, %v755
        %v757 = vpop.f32.mrb[0].mxu0
        %758 = vdwg.mxu0
        %s759 = scalar_lea.vmem %s405, 8 [#allocation10]
        %760 = vst.msk [vmem:[%s759] sm:$0xff] %vm424, %v756
        %s761 = sand.u32 %s177, 1
        %s762 = scalar_lea.sflag [#allocation4], %s761
        %s763 = sand.u32 %s177, 1
        %s764 = smul.addr %s763, 16
        %s765 = scalar_lea.vmem [#allocation10], %s764
        %s766 = sand.u32 %s207, 1
        %s767 = scalar_lea.sflag [#allocation12], %s766
        %s768 = sand.u32 %s207, 1
        %s769 = smul.addr %s768, 16
        %s770 = scalar_lea.vmem [#allocation11], %s769
        // Predicated region
        $region53: #{tpu_custom_call.1} parent=35 // pred_check
          %p771 = pneg %p187
        $region54: #{tpu_custom_call.1} parent=35 // pred_check_branch
          %773 = sbr.rel (%p771) target = $region56
        $region55: #{tpu_custom_call.1} parent=35 // pred_region
          %s774 = smul.u32 2, %s38
          %s776 = ssub.s32 256, 256
          %777 = vsyncadd %s762, %s776
          %s778 = sadd.s32 %s39, %s774
          %s779 = smul.addr %s37, 2
          %s780 = sadd.s32 %s778, %s779
          %s781 = smul.addr %s780, 128
          %s782 = scalar_lea.hbm %s4, %s781
          %s783 = sshll.u32 %s765, 4
          %s784 = int_to_ptr.vmem [resolvable:$true] %s783
          %789 = dma.vmem_to_hbm [thread:$0]  %s784, 256, %s782, %s762, 128, 128, 8
        $region56: #{tpu_custom_call.1} parent=35 // pred_fallthru
          _
        // Predicated region
        $region57: #{tpu_custom_call.1} parent=35 // pred_check
          %p790 = pneg %p217
        $region58: #{tpu_custom_call.1} parent=35 // pred_check_branch
          %792 = sbr.rel (%p790) target = $region60
        $region59: #{tpu_custom_call.1} parent=35 // pred_region
          %s793 = smul.u32 2, %s38
          %s795 = ssub.s32 256, 256
          %796 = vsyncadd %s767, %s795
          %s797 = sadd.s32 %s39, %s793
          %s798 = smul.addr %s37, 2
          %s799 = sadd.s32 %s797, %s798
          %s800 = smul.addr %s799, 128
          %s801 = scalar_lea.hbm %s5, %s800
          %s802 = sshll.u32 %s770, 4
          %s803 = int_to_ptr.vmem [resolvable:$true] %s802
          %808 = dma.vmem_to_hbm [thread:$0]  %s803, 256, %s801, %s767, 128, 128, 8
        $region60: #{tpu_custom_call.1} parent=35 // pred_fallthru
          _
      $region36: #{tpu_custom_call.1} parent=5 // pred_fallthru
        _
      %p809 = scmp.le.s32.totalorder 2, %s27
      // Predicated region
      $region61: #{tpu_custom_call.1} parent=5 // pred_check
        %p810 = pneg %p809
      $region62: #{tpu_custom_call.1} parent=5 // pred_check_branch
        %812 = sbr.rel (%p810) target = $region64
      $region63: #{tpu_custom_call.1} parent=5 // pred_region
        %s813 = ssub.s32 %s27, 2
        // Predicated region
        $region65: #{tpu_custom_call.1} parent=63 // pred_check
          %p814 = pneg %p193
        $region66: #{tpu_custom_call.1} parent=63 // pred_check_branch
          %816 = sbr.rel (%p814) target = $region68
        $region67: #{tpu_custom_call.1} parent=63 // pred_region
          %s817 = sand.u32 %s178, 1
          %s818 = scalar_lea.sflag [#allocation4], %s817
          %s819 = sand.u32 %s178, 1
          %s820 = smul.addr %s819, 16
          %s821 = scalar_lea.vmem [#allocation10], %s820
          %822 = dma.done %s818, 256
        $region68: #{tpu_custom_call.1} parent=63 // pred_fallthru
          _
        // Predicated region
        $region69: #{tpu_custom_call.1} parent=63 // pred_check
          %p823 = pneg %p223
        $region70: #{tpu_custom_call.1} parent=63 // pred_check_branch
          %825 = sbr.rel (%p823) target = $region72
        $region71: #{tpu_custom_call.1} parent=63 // pred_region
          %s826 = sand.u32 %s208, 1
          %s827 = scalar_lea.sflag [#allocation12], %s826
          %s828 = sand.u32 %s208, 1
          %s829 = smul.addr %s828, 16
          %s830 = scalar_lea.vmem [#allocation11], %s829
          %831 = dma.done %s827, 256
        $region72: #{tpu_custom_call.1} parent=63 // pred_fallthru
          _
      $region64: #{tpu_custom_call.1} parent=5 // pred_fallthru
        _
    $region6: #{tpu_custom_call.1} parent=1 // loop_footer
      %s31 = sadd.s32 1, %s27
    $region7: #{tpu_custom_call.1} parent=1 // loop_footer_branch
      %26 = sbr.rel target = $region3
    $region8: #{tpu_custom_call.1} parent=1 // loop_exit
      _
    %832 = vsyncpa [#allocation3], 1
    %s833 = scalar_lea.sflag [#allocation3], 1
    %834 = vsyncpa %s833, 1
    %835 = vsyncpa [#allocation6], 1
    %s836 = scalar_lea.sflag [#allocation6], 1
    %837 = vsyncpa %s836, 1
    %838 = vsyncpa [#allocation9], 1
    %s839 = scalar_lea.sflag [#allocation9], 1
    %840 = vsyncpa %s839, 1
    %841 = vsyncpa [#allocation4], 1
    %s842 = scalar_lea.sflag [#allocation4], 1
    %843 = vsyncpa %s842, 1
    %844 = vsyncpa [#allocation12], 1
    %s845 = scalar_lea.sflag [#allocation12], 1
    %846 = vsyncpa %s845, 1

</llo_original>
